<compile_context>
chip_gen: v5e
topology: v5e:2x2
jax: 0.10.0
libtpu: 0.0.40
codegen_flags: <defaults>
</compile_context>

<pallas_src>
import functools
import math

import jax
import jax.numpy as jnp
from jax import lax
from jax.experimental import pallas as pl
from jax.experimental.pallas import tpu as pltpu


def _tv_kernel(mask_ref, x_ref, out_ref, acc_h_ref, acc_w_ref, *,
               w, num_rows, tb, acc_rows):
    """Accumulates per-lane row-sums of dh^2 and dw^2 over a block of rows."""
    s = pl.program_id(0)          # split index ("parallel" axis)
    j = pl.program_id(1)          # block index within the split ("arbitrary")

    @pl.when(j == 0)
    def _init():
        acc_h_ref[...] = jnp.zeros_like(acc_h_ref)
        acc_w_ref[...] = jnp.zeros_like(acc_w_ref)

    x = x_ref[...].astype(jnp.float32)             # (tb, ll) in f32
    _, ll = x.shape

    # Neighbour values via full-vreg lane rotations: partner index k+w / k+1
    # (mod ll).  (np.roll semantics: roll(x, ll - w)[k] == x[(k + w) % ll].)
    # Wrap-around positions are zeroed by the lane masks applied at finalize
    # (mask multiplications are deferred out of the hot loop).
    x_down = pltpu.roll(x, shift=ll - w, axis=1)   # vertical neighbour
    x_right = pltpu.roll(x, shift=ll - 1, axis=1)  # horizontal neighbour
    dh = x_down - x
    dw = x_right - x
    sq_h = dh * dh
    sq_w = dw * dw

    def _accumulate(sqh, sqw):
        if acc_rows == 8:
            # Sublane-aligned partial reduction: straight VPU adds per step.
            acc_h_ref[...] += jnp.sum(sqh.reshape(tb // 8, 8, ll), axis=0)
            acc_w_ref[...] += jnp.sum(sqw.reshape(tb // 8, 8, ll), axis=0)
        else:
            acc_h_ref[...] += jnp.sum(sqh, axis=0, keepdims=True)
            acc_w_ref[...] += jnp.sum(sqw, axis=0, keepdims=True)

    # Only the ragged tail block / clamped redundant blocks pay the
    # iota + compare + select; interior blocks skip it entirely.
    lin_block = s * pl.num_programs(1) + j          # unclamped linear block id
    is_edge = (lin_block + 1) * tb > num_rows

    @pl.when(jnp.logical_not(is_edge))
    def _interior():
        _accumulate(sq_h, sq_w)

    @pl.when(is_edge)
    def _edge():
        row = lax.broadcasted_iota(jnp.int32, (tb, 1), 0)
        valid = (lin_block * tb + row) < num_rows
        # Keep select (not multiply) so non-finite OOB garbage stays neutral.
        _accumulate(jnp.where(valid, sq_h, 0.0), jnp.where(valid, sq_w, 0.0))

    @pl.when(j == pl.num_programs(1) - 1)
    def _finalize():
        mh = mask_ref[0:1, :]      # 1/count_h where a vertical diff is valid
        mw = mask_ref[1:2, :]      # 1/count_w where a horizontal diff is valid
        out_ref[...] = (jnp.sum(acc_h_ref[...] * mh)
                        + jnp.sum(acc_w_ref[...] * mw)).reshape(1, 1, 1)


def _tpu_defaults():
    """Per-generation block-size / split-count / VMEM-cap defaults."""
    kind = ""
    try:
        kind = jax.devices()[0].device_kind.lower()
    except Exception:
        pass
    if "v7" in kind or "7x" in kind:
        # 2 TCs/chip, 64 MiB VMEM/TC, ~3.2 TB/s HBM: big blocks, both cores.
        return {"target_block_bytes": 4 << 20, "num_splits": 2,
                "vmem_cap": 48 << 20}
    if "v6" in kind:
        return {"target_block_bytes": 2 << 20, "num_splits": 1,
                "vmem_cap": 96 << 20}
    if "v5" in kind:
        return {"target_block_bytes": 1 << 20, "num_splits": 1,
                "vmem_cap": 96 << 20}
    return {"target_block_bytes": 1 << 20, "num_splits": 1,
            "vmem_cap": 32 << 20}


def l_tv_pallas(x, tv_loss_weight: float = 1.0, *,
                target_block_bytes: int | None = None,
                num_splits: int | None = None):
    """Total-variation loss, semantics identical to the PyTorch L_TV module.

    x: (N, C, H, W) array (any float dtype). Returns a float32 scalar.
    """
    n, c, h, w = x.shape
    p = n * c
    ll = h * w
    count_h = float((h - 1) * w)
    count_w = float(h * (w - 1))
    # Degenerate h==1 / w==1 divides by zero in PyTorch too; avoid a Python
    # ZeroDivisionError here (result is 0-weighted in that case).
    inv_ch = (1.0 / count_h) if count_h > 0 else 0.0
    inv_cw = (1.0 / count_w) if count_w > 0 else 0.0

    defaults = _tpu_defaults()
    if target_block_bytes is None:
        target_block_bytes = defaults["target_block_bytes"]
    if num_splits is None:
        num_splits = defaults["num_splits"]
    vmem_cap = int(defaults["vmem_cap"])

    # Lane-density repack: fold G planes per row when H*W % 128 != 0 so every
    # vreg / DMA beat is fully used and the rolls stay 128-aligned.  Wrap
    # positions of the roll land exactly on per-plane mask zeros, so neighbour
    # semantics are unchanged.  Free for contiguous NCHW (pure reshape).
    g = 1
    if ll % 128 != 0:
        g0 = 128 // math.gcd(ll, 128)
        if p % g0 == 0:
            g = g0
    p2 = p // g
    ll2 = ll * g
    x2 = x.reshape(p2, ll2)

    # Per-position validity masks with 1/count folded in, tiled per folded plane.
    k = jnp.arange(ll, dtype=jnp.int32)
    mh = (k < (h - 1) * w).astype(jnp.float32) * inv_ch
    mw = ((k % w) != (w - 1)).astype(jnp.float32) * inv_cw
    masks = jnp.stack([mh, mw], axis=0)            # (2, ll)
    if g > 1:
        masks = jnp.tile(masks, (1, g))            # (2, ll2)

    # Rows per block: ~target_block_bytes of source-dtype data per grid step.
    # Second-minor block dim must be a multiple of 8 or equal the full extent.
    row_bytes = ll2 * x.dtype.itemsize
    tb = max(1, int(target_block_bytes) // int(row_bytes))
    if tb >= p2:
        tb = p2
    else:
        tb = max(8, (tb // 8) * 8)

    def _footprint(tb_):
        src = 2 * tb_ * row_bytes          # double-buffered source-dtype input
        temps = 5 * tb_ * ll2 * 4          # f32 intermediates (x, rolls, sq)
        accs = 2 * 8 * ll2 * 4             # (8, L) accumulators
        msk = 2 * 2 * ll2 * 4              # masks (double-buffered)
        return src + temps + accs + msk + (2 << 20)   # + slack

    # Shrink the block until the conservative footprint fits the VMEM cap.
    while tb > 8 and _footprint(tb) > vmem_cap:
        tb = max(8, ((tb // 2) // 8) * 8)

    acc_rows = 8 if (tb % 8 == 0) else 1   # tiny inputs may use tb == p2 < 8
    num_blocks = pl.cdiv(p2, tb)
    num_splits = int(max(1, min(num_splits, num_blocks)))
    bps = pl.cdiv(num_blocks, num_splits)  # blocks per split

    kernel = functools.partial(_tv_kernel, w=w, num_rows=p2, tb=tb,
                               acc_rows=acc_rows)

    def x_index_map(s, j):
        # Clamp so redundant visits of the last split re-use the final block
        # (no OOB DMA); they are fully masked out in-kernel (edge path).
        return (jnp.minimum(s * bps + j, num_blocks - 1), 0)

    out_bytes = num_splits * 4
    cost = pl.CostEstimate(
        flops=int(8 * p2 * ll2),
        transcendentals=0,
        bytes_accessed=int(x2.size * x.dtype.itemsize + masks.size * 4 + out_bytes),
    )

    partials = pl.pallas_call(
        kernel,
        out_shape=jax.ShapeDtypeStruct((num_splits, 1, 1), jnp.float32),
        grid=(num_splits, bps),
        in_specs=[
            pl.BlockSpec((2, ll2), lambda s, j: (0, 0)),     # masks (loaded once)
            pl.BlockSpec((tb, ll2), x_index_map),            # row block
        ],
        out_specs=pl.BlockSpec((1, 1, 1), lambda s, j: (s, 0, 0)),
        scratch_shapes=[
            pltpu.VMEM((acc_rows, ll2), jnp.float32),        # acc for dh^2
            pltpu.VMEM((acc_rows, ll2), jnp.float32),        # acc for dw^2
        ],
        compiler_params=pltpu.CompilerParams(
            dimension_semantics=("parallel", "arbitrary"),
            vmem_limit_bytes=vmem_cap,
        ),
        cost_estimate=cost,
    )(masks, x2)

    # Tiny final reduction + normalisation in the wrapper.
    return (tv_loss_weight * 2.0 / n) * jnp.sum(partials)


def l_tv_reference(x, tv_loss_weight: float = 1.0):
    """Pure-JAX reference mirroring the PyTorch forward exactly."""
    n = x.shape[0]
    h = x.shape[2]
    w = x.shape[3]
    count_h = (h - 1) * w
    count_w = h * (w - 1)
    xf = x.astype(jnp.float32)
    h_tv = jnp.sum(jnp.square(xf[:, :, 1:, :] - xf[:, :, : h - 1, :]))
    w_tv = jnp.sum(jnp.square(xf[:, :, :, 1:] - xf[:, :, :, : w - 1]))
    return tv_loss_weight * 2.0 * (h_tv / count_h + w_tv / count_w) / n


if __name__ == "__main__":
    key = jax.random.PRNGKey(0)

    # Primary check: small NCHW input consistent with the module's 4-D input.
    x = jax.random.normal(key, (2, 4, 16, 16), dtype=jnp.float32)
    loss = jax.block_until_ready(l_tv_pallas(x, tv_loss_weight=1.0))
    ref = l_tv_reference(x, tv_loss_weight=1.0)
    assert jnp.allclose(loss, ref, rtol=1e-4, atol=1e-5), (loss, ref)

    # Secondary check: ragged plane count + multi-block grid + 2-way split,
    # exercising the gated edge-path masking and the clamped redundant block.
    x2 = jax.random.normal(jax.random.PRNGKey(1), (4, 5, 8, 16), dtype=jnp.float32)
    loss2 = jax.block_until_ready(
        l_tv_pallas(x2, tv_loss_weight=0.5, target_block_bytes=2048, num_splits=2))
    ref2 = l_tv_reference(x2, tv_loss_weight=0.5)
    assert jnp.allclose(loss2, ref2, rtol=1e-4, atol=1e-5), (loss2, ref2)

    # Third check: H*W not a multiple of 128 -> plane-folding repack path.
    x3 = jax.random.normal(jax.random.PRNGKey(2), (2, 4, 8, 8), dtype=jnp.bfloat16)
    loss3 = jax.block_until_ready(l_tv_pallas(x3, tv_loss_weight=1.0))
    ref3 = l_tv_reference(x3, tv_loss_weight=1.0)
    assert jnp.allclose(loss3, ref3, rtol=2e-2, atol=1e-3), (loss3, ref3)

    print("KERNEL_OK")
</pallas_src>

<mosaic_0001>
module attributes {stable_mosaic.version = 11 : i64} {
  func.func @_tv_kernel(%arg0: i32, %arg1: i32, %arg2: memref<2x256xf32, #tpu.memory_space<vmem>>, %arg3: memref<8x256xf32, #tpu.memory_space<vmem>>, %arg4: memref<1x1x1xf32, #tpu.memory_space<vmem>>, %arg5: memref<8x256xf32, #tpu.memory_space<vmem>>, %arg6: memref<8x256xf32, #tpu.memory_space<vmem>>) attributes {dimension_semantics = [#tpu.dimension_semantics<parallel>, #tpu.dimension_semantics<arbitrary>], iteration_bounds = array<i64: 1, 1>, scalar_prefetch = 0 : i64, scratch_operands = 2 : i64, tpu.core_type = #tpu.core_type<tc>, window_params = [{pipeline_mode = #tpu.pipeline_mode<synchronous>, transform_indices = @transform_0, window_bounds = array<i64: 2, 256>}, {transform_indices = @transform_1, window_bounds = array<i64: 8, 256>}, {transform_indices = @transform_2, window_bounds = array<i64: 1, 1, 1>}]} {
    %c0_i32 = arith.constant 0 : i32
    %0 = arith.cmpi eq, %arg1, %c0_i32 : i32
    %1 = arith.extui %0 : i1 to i32
    %c0_i32_0 = arith.constant 0 : i32
    %2 = arith.cmpi ne, %1, %c0_i32_0 : i32
    scf.if %2 {
      %cst = arith.constant 0.000000e+00 : f32
      %23 = vector.broadcast %cst : f32 to vector<8x256xf32>
      %c0_8 = arith.constant 0 : index
      %c0_9 = arith.constant 0 : index
      %24 = vector.load %arg5[%c0_8, %c0_9] : memref<8x256xf32, #tpu.memory_space<vmem>>, vector<8x256xf32>
      tpu.vector_store %arg5[%c0_8, %c0_9], %23 {strides = array<i32>} : memref<8x256xf32, #tpu.memory_space<vmem>>, vector<8x256xf32>,
      %cst_10 = arith.constant 0.000000e+00 : f32
      %25 = vector.broadcast %cst_10 : f32 to vector<8x256xf32>
      %c0_11 = arith.constant 0 : index
      %c0_12 = arith.constant 0 : index
      %26 = vector.load %arg6[%c0_11, %c0_12] : memref<8x256xf32, #tpu.memory_space<vmem>>, vector<8x256xf32>
      tpu.vector_store %arg6[%c0_11, %c0_12], %25 {strides = array<i32>} : memref<8x256xf32, #tpu.memory_space<vmem>>, vector<8x256xf32>,
    } else {
    }
    %c0 = arith.constant 0 : index
    %c0_1 = arith.constant 0 : index
    %3 = vector.load %arg3[%c0, %c0_1] : memref<8x256xf32, #tpu.memory_space<vmem>>, vector<8x256xf32>
    %c240_i32 = arith.constant 240 : i32
    %4 = tpu.dynamic_rotate %3 by %c240_i32 dim 1 : vector<8x256xf32>, i32 -> vector<8x256xf32>
    %c255_i32 = arith.constant 255 : i32
    %5 = tpu.dynamic_rotate %3 by %c255_i32 dim 1 : vector<8x256xf32>, i32 -> vector<8x256xf32>
    %6 = arith.subf %4, %3 : vector<8x256xf32>
    %7 = arith.subf %5, %3 : vector<8x256xf32>
    %8 = arith.mulf %6, %6 : vector<8x256xf32>
    %9 = arith.mulf %7, %7 : vector<8x256xf32>
    %c1_i32 = arith.constant 1 : i32
    %10 = arith.muli %arg0, %c1_i32 : i32
    %11 = arith.addi %10, %arg1 : i32
    %c1_i32_2 = arith.constant 1 : i32
    %12 = arith.addi %11, %c1_i32_2 : i32
    %c8_i32 = arith.constant 8 : i32
    %13 = arith.muli %12, %c8_i32 : i32
    %c8_i32_3 = arith.constant 8 : i32
    %14 = arith.cmpi sgt, %13, %c8_i32_3 : i32
    %true = arith.constant true
    %15 = arith.xori %14, %true : i1
    %16 = arith.extui %15 : i1 to i32
    %c0_i32_4 = arith.constant 0 : i32
    %17 = arith.cmpi ne, %16, %c0_i32_4 : i32
    scf.if %17 {
      %c0_8 = arith.constant 0 : index
      %c0_9 = arith.constant 0 : index
      %23 = vector.load %arg5[%c0_8, %c0_9] : memref<8x256xf32, #tpu.memory_space<vmem>>, vector<8x256xf32>
      %24 = vector.shape_cast %8 : vector<8x256xf32> to vector<1x8x256xf32>
      %cst = arith.constant dense<0.000000e+00> : vector<8x256xf32>
      %25 = vector.multi_reduction <add>, %24, %cst [0] : vector<1x8x256xf32> to vector<8x256xf32>
      %26 = arith.addf %23, %25 : vector<8x256xf32>
      %c0_10 = arith.constant 0 : index
      %c0_11 = arith.constant 0 : index
      %27 = vector.load %arg5[%c0_10, %c0_11] : memref<8x256xf32, #tpu.memory_space<vmem>>, vector<8x256xf32>
      tpu.vector_store %arg5[%c0_10, %c0_11], %26 {strides = array<i32>} : memref<8x256xf32, #tpu.memory_space<vmem>>, vector<8x256xf32>,
      %c0_12 = arith.constant 0 : index
      %c0_13 = arith.constant 0 : index
      %28 = vector.load %arg6[%c0_12, %c0_13] : memref<8x256xf32, #tpu.memory_space<vmem>>, vector<8x256xf32>
      %29 = vector.shape_cast %9 : vector<8x256xf32> to vector<1x8x256xf32>
      %cst_14 = arith.constant dense<0.000000e+00> : vector<8x256xf32>
      %30 = vector.multi_reduction <add>, %29, %cst_14 [0] : vector<1x8x256xf32> to vector<8x256xf32>
      %31 = arith.addf %28, %30 : vector<8x256xf32>
      %c0_15 = arith.constant 0 : index
      %c0_16 = arith.constant 0 : index
      %32 = vector.load %arg6[%c0_15, %c0_16] : memref<8x256xf32, #tpu.memory_space<vmem>>, vector<8x256xf32>
      tpu.vector_store %arg6[%c0_15, %c0_16], %31 {strides = array<i32>} : memref<8x256xf32, #tpu.memory_space<vmem>>, vector<8x256xf32>,
    } else {
    }
    %18 = arith.extui %14 : i1 to i32
    %c0_i32_5 = arith.constant 0 : i32
    %19 = arith.cmpi ne, %18, %c0_i32_5 : i32
    scf.if %19 {
      %23 = tpu.iota {dimensions = array<i32: 0>} : vector<8x1xi32>
      %c8_i32_8 = arith.constant 8 : i32
      %24 = arith.muli %11, %c8_i32_8 : i32
      %25 = vector.broadcast %24 : i32 to vector<8x1xi32>
      %26 = arith.addi %25, %23 : vector<8x1xi32>
      %c8_i32_9 = arith.constant 8 : i32
      %27 = vector.broadcast %c8_i32_9 : i32 to vector<8x1xi32>
      %28 = arith.cmpi slt, %26, %27 : vector<8x1xi32>
      %cst = arith.constant 0.000000e+00 : f32
      %29 = vector.shape_cast %28 : vector<8x1xi1> to vector<8x1xi1>
      %30 = vector.broadcast %29 : vector<8x1xi1> to vector<8x256xi1>
      %31 = vector.broadcast %cst : f32 to vector<8x256xf32>
      %32 = arith.select %30, %8, %31 : vector<8x256xi1>, vector<8x256xf32>
      %cst_10 = arith.constant 0.000000e+00 : f32
      %33 = vector.shape_cast %28 : vector<8x1xi1> to vector<8x1xi1>
      %34 = vector.broadcast %33 : vector<8x1xi1> to vector<8x256xi1>
      %35 = vector.broadcast %cst_10 : f32 to vector<8x256xf32>
      %36 = arith.select %34, %9, %35 : vector<8x256xi1>, vector<8x256xf32>
      %c0_11 = arith.constant 0 : index
      %c0_12 = arith.constant 0 : index
      %37 = vector.load %arg5[%c0_11, %c0_12] : memref<8x256xf32, #tpu.memory_space<vmem>>, vector<8x256xf32>
      %38 = vector.shape_cast %32 : vector<8x256xf32> to vector<1x8x256xf32>
      %cst_13 = arith.constant dense<0.000000e+00> : vector<8x256xf32>
      %39 = vector.multi_reduction <add>, %38, %cst_13 [0] : vector<1x8x256xf32> to vector<8x256xf32>
      %40 = arith.addf %37, %39 : vector<8x256xf32>
      %c0_14 = arith.constant 0 : index
      %c0_15 = arith.constant 0 : index
      %41 = vector.load %arg5[%c0_14, %c0_15] : memref<8x256xf32, #tpu.memory_space<vmem>>, vector<8x256xf32>
      tpu.vector_store %arg5[%c0_14, %c0_15], %40 {strides = array<i32>} : memref<8x256xf32, #tpu.memory_space<vmem>>, vector<8x256xf32>,
      %c0_16 = arith.constant 0 : index
      %c0_17 = arith.constant 0 : index
      %42 = vector.load %arg6[%c0_16, %c0_17] : memref<8x256xf32, #tpu.memory_space<vmem>>, vector<8x256xf32>
      %43 = vector.shape_cast %36 : vector<8x256xf32> to vector<1x8x256xf32>
      %cst_18 = arith.constant dense<0.000000e+00> : vector<8x256xf32>
      %44 = vector.multi_reduction <add>, %43, %cst_18 [0] : vector<1x8x256xf32> to vector<8x256xf32>
      %45 = arith.addf %42, %44 : vector<8x256xf32>
      %c0_19 = arith.constant 0 : index
      %c0_20 = arith.constant 0 : index
      %46 = vector.load %arg6[%c0_19, %c0_20] : memref<8x256xf32, #tpu.memory_space<vmem>>, vector<8x256xf32>
      tpu.vector_store %arg6[%c0_19, %c0_20], %45 {strides = array<i32>} : memref<8x256xf32, #tpu.memory_space<vmem>>, vector<8x256xf32>,
    } else {
    }
    %c0_i32_6 = arith.constant 0 : i32
    %20 = arith.cmpi eq, %arg1, %c0_i32_6 : i32
    %21 = arith.extui %20 : i1 to i32
    %c0_i32_7 = arith.constant 0 : i32
    %22 = arith.cmpi ne, %21, %c0_i32_7 : i32
    scf.if %22 {
      %c0_8 = arith.constant 0 : index
      %c0_9 = arith.constant 0 : index
      %23 = vector.load %arg2[%c0_8, %c0_9] : memref<2x256xf32, #tpu.memory_space<vmem>>, vector<1x256xf32>
      %c1 = arith.constant 1 : index
      %c0_10 = arith.constant 0 : index
      %24 = vector.load %arg2[%c1, %c0_10] : memref<2x256xf32, #tpu.memory_space<vmem>>, vector<1x256xf32>
      %c0_11 = arith.constant 0 : index
      %c0_12 = arith.constant 0 : index
      %25 = vector.load %arg5[%c0_11, %c0_12] : memref<8x256xf32, #tpu.memory_space<vmem>>, vector<8x256xf32>
      %26 = vector.broadcast %23 : vector<1x256xf32> to vector<8x256xf32>
      %27 = arith.mulf %25, %26 : vector<8x256xf32>
      %28 = vector.shape_cast %27 : vector<8x256xf32> to vector<1x8x256xf32>
      %cst = arith.constant dense<0.000000e+00> : vector<1xf32>
      %29 = vector.multi_reduction <add>, %28, %cst [1, 2] : vector<1x8x256xf32> to vector<1xf32>
      %30 = vector.shape_cast %29 : vector<1xf32> to vector<1x1x1xf32>
      %31 = vector.extract %30[0, 0, 0] : f32 from vector<1x1x1xf32>
      %c0_13 = arith.constant 0 : index
      %c0_14 = arith.constant 0 : index
      %32 = vector.load %arg6[%c0_13, %c0_14] : memref<8x256xf32, #tpu.memory_space<vmem>>, vector<8x256xf32>
      %33 = vector.broadcast %24 : vector<1x256xf32> to vector<8x256xf32>
      %34 = arith.mulf %32, %33 : vector<8x256xf32>
      %35 = vector.shape_cast %34 : vector<8x256xf32> to vector<1x8x256xf32>
      %cst_15 = arith.constant dense<0.000000e+00> : vector<1xf32>
      %36 = vector.multi_reduction <add>, %35, %cst_15 [1, 2] : vector<1x8x256xf32> to vector<1xf32>
      %37 = vector.shape_cast %36 : vector<1xf32> to vector<1x1x1xf32>
      %38 = vector.extract %37[0, 0, 0] : f32 from vector<1x1x1xf32>
      %39 = arith.addf %31, %38 : f32
      %40 = vector.broadcast %39 : f32 to vector<1x1x1xf32>
      %c0_16 = arith.constant 0 : index
      %c0_17 = arith.constant 0 : index
      %c0_18 = arith.constant 0 : index
      %41 = vector.load %arg4[%c0_16, %c0_17, %c0_18] : memref<1x1x1xf32, #tpu.memory_space<vmem>>, vector<1x1x1xf32>
      tpu.vector_store %arg4[%c0_16, %c0_17, %c0_18], %40 {strides = array<i32>} : memref<1x1x1xf32, #tpu.memory_space<vmem>>, vector<1x1x1xf32>,
    } else {
    }
    return
  }
  func.func @transform_0(%arg0: i32, %arg1: i32) -> (i32, i32) {
    %c0_i32 = arith.constant 0 : i32
    %c0_i32_0 = arith.constant 0 : i32
    %c0_i32_1 = arith.constant 0 : i32
    return %c0_i32, %c0_i32_0 : i32, i32
  }
  func.func @transform_1(%arg0: i32, %arg1: i32) -> (i32, i32) {
    %c1_i32 = arith.constant 1 : i32
    %0 = arith.muli %arg0, %c1_i32 : i32
    %1 = arith.addi %0, %arg1 : i32
    %c0_i32 = arith.constant 0 : i32
    %2 = arith.minsi %1, %c0_i32 : i32
    %c0_i32_0 = arith.constant 0 : i32
    %c0_i32_1 = arith.constant 0 : i32
    return %2, %c0_i32_0 : i32, i32
  }
  func.func @transform_2(%arg0: i32, %arg1: i32) -> (i32, i32, i32) {
    %c0_i32 = arith.constant 0 : i32
    %c0_i32_0 = arith.constant 0 : i32
    %c0_i32_1 = arith.constant 0 : i32
    return %arg0, %c0_i32, %c0_i32_0 : i32, i32, i32
  }
}

</mosaic_0001>

<llo_original>
// kernel: tpu_custom_call.1
$region0: #{tpu_custom_call.1}
  #allocation0 [shape = 'u32[]', space=smem, size = 0x4, offset = 0x4, fixed_abs, tag = 'smem constant byte address 0x4 - core index']
  #allocation1 [shape = 'u32[72,128]{1,0:T(1,128)}', space=vmem, size = 0x9000, scoped, tag = 'internal scratch']
  #allocation2 [shape = 'f32[8,256]{1,0:T(8,128)}', space=vmem, size = 0x2000, scoped, tag = 'scratch operand']
  #allocation3 [shape = 'f32[8,256]{1,0:T(8,128)}', space=vmem, size = 0x2000, scoped, tag = 'scratch operand']
  %s0 = inlined_call_operand.hbm [shape: f32[2,256], index: 0, kind: input, shape index: {}]
  %s1 = inlined_call_operand.hbm [shape: f32[8,256], index: 1, kind: input, shape index: {}]
  %s2 = inlined_call_operand.hbm [shape: f32[1,1,1], index: 2, kind: output, shape index: {}]
  %s3 = sld [smem:[#allocation0]]
  $region42: #{tpu_custom_call.1} parent=0
    _
  %s5 = ssub.s32 1, %s3
  %s6 = scalar_select 0, %s5, %s3
  $region1: #{tpu_custom_call.1} parent=0
    #allocation4 [shape = 'u8[2048]{0}', space=vmem, size = 0x800, scoped, tag = 'input window, operand 0, single buffered']
    #allocation5 [shape = 's32[1]{0}', space=sflag, size = 0x4, scoped, tag = 'scoped memory for tpu_custom_call.1']
    #allocation6 [shape = 's32[1]{0}', space=sflag, size = 0x4, scoped, tag = 'scoped memory for tpu_custom_call.1']
    #allocation7 [shape = 'u8[8192]{0}', space=vmem, size = 0x2000, scoped, tag = 'input window, operand 1, single buffered']
    #allocation8 [shape = 's32[1]{0}', space=sflag, size = 0x4, scoped, tag = 'scoped memory for tpu_custom_call.1']
    #allocation9 [shape = 'u8[512]{0}', space=vmem, size = 0x400, scoped, tag = 'output window, operand 0, single buffered']
    %7 = vsyncpa [#allocation5], 0
    %8 = vsyncpa [#allocation8], 0
    %9 = vsyncpa [#allocation6], 0
    // Predicated region
    $region2: #{tpu_custom_call.1} parent=1 // pred_check
      _
    $region3: #{tpu_custom_call.1} parent=1 // pred_check_branch
      %11 = sbr.rel (0) target = $region5
    $region4: #{tpu_custom_call.1} parent=1 // pred_region
      %13 = vsyncadd [#allocation5], 0
      %s15 = sshll.u32 %s0, 4
      %s16 = int_to_ptr.hbm [resolvable:$true] %s15
      %s17 = sshll.u32 [#allocation4], 4
      %s18 = int_to_ptr.vmem [resolvable:$true] %s17
      %20 = dma.hbm_to_vmem [thread:$0]  %s16, 64, %s18, [#allocation5]
    $region5: #{tpu_custom_call.1} parent=1 // pred_fallthru
      _
    // Predicated region
    $region6: #{tpu_custom_call.1} parent=1 // pred_check
      _
    $region7: #{tpu_custom_call.1} parent=1 // pred_check_branch
      %22 = sbr.rel (0) target = $region9
    $region8: #{tpu_custom_call.1} parent=1 // pred_region
      %s23 = sadd.s32 0, 0
      %p24 = scmp.lt.s32.totalorder %s23, 0
      %s25 = scalar_select %p24, %s23, 0
      %27 = vsyncadd [#allocation8], 0
      %s28 = smul.addr %s25, 2
      %s29 = smul.addr %s28, 8
      %s30 = scalar_lea.hbm %s1, %s29
      %s32 = sshll.u32 %s30, 4
      %s33 = int_to_ptr.hbm [resolvable:$true] %s32
      %s34 = sshll.u32 [#allocation7], 4
      %s35 = int_to_ptr.vmem [resolvable:$true] %s34
      %37 = dma.hbm_to_vmem [thread:$0]  %s33, 256, %s35, [#allocation8]
    $region9: #{tpu_custom_call.1} parent=1 // pred_fallthru
      _
    // Predicated region
    $region10: #{tpu_custom_call.1} parent=1 // pred_check
      _
    $region11: #{tpu_custom_call.1} parent=1 // pred_check_branch
      %39 = sbr.rel (0) target = $region13
    $region12: #{tpu_custom_call.1} parent=1 // pred_region
      %41 = dma.done [#allocation5], 64
    $region13: #{tpu_custom_call.1} parent=1 // pred_fallthru
      _
    // Predicated region
    $region14: #{tpu_custom_call.1} parent=1 // pred_check
      _
    $region15: #{tpu_custom_call.1} parent=1 // pred_check_branch
      %43 = sbr.rel (0) target = $region17
    $region16: #{tpu_custom_call.1} parent=1 // pred_region
      %45 = dma.done [#allocation8], 256
    $region17: #{tpu_custom_call.1} parent=1 // pred_fallthru
      _
    %s46 = sadd.s32 0, 0
    %p47 = scmp.lt.s32.totalorder %s46, 0
    %s48 = scalar_select %p47, %s46, 0
    %p49 = scmp.eq.s32.totalorder 0, 0
    // Predicated region
    $region18: #{tpu_custom_call.1} parent=1 // pred_check
      %p50 = pneg %p49
    $region19: #{tpu_custom_call.1} parent=1 // pred_check_branch
      %52 = sbr.rel (%p50) target = $region21
    $region20: #{tpu_custom_call.1} parent=1 // pred_region
      %53 = vst [vmem:[#allocation2] sm:$0xff] 0.0
      %54 = vst [vmem:[#allocation2 + $0x8] sm:$0xff] 0.0
      %55 = vst [vmem:[#allocation3] sm:$0xff] 0.0
      %56 = vst [vmem:[#allocation3 + $0x8] sm:$0xff] 0.0
    $region21: #{tpu_custom_call.1} parent=1 // pred_fallthru
      _
    %v57 = vld [vmem:[#allocation7] sm:$0xff]
    %v58 = vld [vmem:[#allocation7 + $0x8] sm:$0xff]
    %59 = vrot.lane.b32.xlu0 %v57, 112
    %v60 = vpop.permute.xlu0 %59
    %61 = vrot.lane.b32.xlu0 %v58, 112
    %v62 = vpop.permute.xlu0 %61
    %v63 = vlaneseq
    %v64 = vand.u32 %v63, 127
    %vm65 = vcmp.lt.s32.totalorder %v64, 112
    %v66 = vsel %vm65, %v60, %v62
    %v67 = vsel %vm65, %v62, %v60
    %68 = vrot.lane.b32.xlu0 %v57, 127
    %v69 = vpop.permute.xlu0 %68
    %70 = vrot.lane.b32.xlu0 %v58, 127
    %v71 = vpop.permute.xlu0 %70
    %vm72 = vcmp.lt.s32.totalorder %v64, 127
    %v73 = vsel %vm72, %v69, %v71
    %v74 = vsel %vm72, %v71, %v69
    %v75 = vsub.f32 %v66, %v57
    %v76 = vsub.f32 %v67, %v58
    %v77 = vsub.f32 %v73, %v57
    %v78 = vsub.f32 %v74, %v58
    %v79 = vmul.f32 %v75, %v75
    %v80 = vmul.f32 %v76, %v76
    %v81 = vmul.f32 %v77, %v77
    %v82 = vmul.f32 %v78, %v78
    %s83 = sadd.s32 0, 0
    %s84 = sadd.s32 %s83, 1
    %s85 = smul.u32 %s84, 8
    %p86 = scmp.gt.s32.totalorder %s85, 8
    %p87 = scmp.le.s32.totalorder %s85, 8
    // Predicated region
    $region22: #{tpu_custom_call.1} parent=1 // pred_check
      %p88 = pneg %p87
    $region23: #{tpu_custom_call.1} parent=1 // pred_check_branch
      %90 = sbr.rel (%p88) target = $region25
    $region24: #{tpu_custom_call.1} parent=1 // pred_region
      %v91 = vld [vmem:[#allocation2] sm:$0xff]
      %v92 = vld [vmem:[#allocation2 + $0x8] sm:$0xff]
      %v93 = vadd.f32 %v79, 0.0
      %v94 = vadd.f32 %v80, 0.0
      %v95 = vadd.f32 %v91, %v93
      %v96 = vadd.f32 %v92, %v94
      %97 = vst [vmem:[#allocation2] sm:$0xff] %v95
      %98 = vst [vmem:[#allocation2 + $0x8] sm:$0xff] %v96
      %v99 = vld [vmem:[#allocation3] sm:$0xff]
      %v100 = vld [vmem:[#allocation3 + $0x8] sm:$0xff]
      %v101 = vadd.f32 %v81, 0.0
      %v102 = vadd.f32 %v82, 0.0
      %v103 = vadd.f32 %v99, %v101
      %v104 = vadd.f32 %v100, %v102
      %105 = vst [vmem:[#allocation3] sm:$0xff] %v103
      %106 = vst [vmem:[#allocation3 + $0x8] sm:$0xff] %v104
    $region25: #{tpu_custom_call.1} parent=1 // pred_fallthru
      _
    // Predicated region
    $region26: #{tpu_custom_call.1} parent=1 // pred_check
      %p107 = pneg %p86
    $region27: #{tpu_custom_call.1} parent=1 // pred_check_branch
      %109 = sbr.rel (%p107) target = $region29
    $region28: #{tpu_custom_call.1} parent=1 // pred_region
      %v110 = vlaneseq
      %v111 = vshrl.u32 %v110, 7
      %s112 = smul.u32 %s83, 8
      %v113 = vstv %s112
      %v114 = vadd.s32 %v113, %v111
      %vm115 = vcmp.lt.s32.totalorder %v114, 8
      %v116 = vsel %vm115, 1, 0
      %vm117 = vcmp.eq.s32.totalorder %v116, 1
      %v118 = vsel %vm117, %v79, 0.0
      %v119 = vsel %vm117, %v80, 0.0
      %v120 = vsel %vm117, %v81, 0.0
      %v121 = vsel %vm117, %v82, 0.0
      %v122 = vld [vmem:[#allocation2] sm:$0xff]
      %v123 = vld [vmem:[#allocation2 + $0x8] sm:$0xff]
      %v124 = vadd.f32 %v118, 0.0
      %v125 = vadd.f32 %v119, 0.0
      %v126 = vadd.f32 %v122, %v124
      %v127 = vadd.f32 %v123, %v125
      %128 = vst [vmem:[#allocation2] sm:$0xff] %v126
      %129 = vst [vmem:[#allocation2 + $0x8] sm:$0xff] %v127
      %v130 = vld [vmem:[#allocation3] sm:$0xff]
      %v131 = vld [vmem:[#allocation3 + $0x8] sm:$0xff]
      %v132 = vadd.f32 %v120, 0.0
      %v133 = vadd.f32 %v121, 0.0
      %v134 = vadd.f32 %v130, %v132
      %v135 = vadd.f32 %v131, %v133
      %136 = vst [vmem:[#allocation3] sm:$0xff] %v134
      %137 = vst [vmem:[#allocation3 + $0x8] sm:$0xff] %v135
    $region29: #{tpu_custom_call.1} parent=1 // pred_fallthru
      _
    // Predicated region
    $region30: #{tpu_custom_call.1} parent=1 // pred_check
      %p138 = pneg %p49
    $region31: #{tpu_custom_call.1} parent=1 // pred_check_branch
      %140 = sbr.rel (%p138) target = $region33
    $region32: #{tpu_custom_call.1} parent=1 // pred_region
      %v141 = vld [vmem:[#allocation4] ss:$2 sm:$0x3]
      %s142 = scalar_lea.vmem [#allocation4], 1
      %v143 = vld [vmem:[%s142] ss:$2 sm:$0x3]
      %v144 = vld [vmem:[#allocation2] sm:$0xff]
      %v145 = vld [vmem:[#allocation2 + $0x8] sm:$0xff]
      %v147 = vperm.slane %v141, 0
      %v148 = vperm.slane %v141, 1
      %v151 = vmul.f32 %v144, %v147
      %v152 = vmul.f32 %v145, %v148
      %v153 = vadd.f32 %v151, %v152
      %154 = vadd.xlane.f32.xlu0 %v153
      %v155 = vpop.xlane.xlu0 %154
      %v156 = vrot.slane %v155, 4
      %v157 = vadd.f32 %v155, %v156
      %v158 = vrot.slane %v157, 2
      %v159 = vadd.f32 %v157, %v158
      %v160 = vrot.slane %v159, 1
      %v161 = vadd.f32 %v159, %v160
      %s162 = vtos %v161
      %v163 = vld [vmem:[#allocation3] sm:$0xff]
      %v164 = vld [vmem:[#allocation3 + $0x8] sm:$0xff]
      %v166 = vperm.slane %v143, 0
      %v167 = vperm.slane %v143, 1
      %v170 = vmul.f32 %v163, %v166
      %v171 = vmul.f32 %v164, %v167
      %v172 = vadd.f32 %v170, %v171
      %173 = vadd.xlane.f32.xlu0 %v172
      %v174 = vpop.xlane.xlu0 %173
      %v175 = vrot.slane %v174, 4
      %v176 = vadd.f32 %v174, %v175
      %v177 = vrot.slane %v176, 2
      %v178 = vadd.f32 %v176, %v177
      %v179 = vrot.slane %v178, 1
      %v180 = vadd.f32 %v178, %v179
      %s181 = vtos %v180
      %s182 = sadd.f32 %s162, %s181
      %v183 = vstv %s182
      %vm184 = vcmask 0
      %185 = vst.msk [vmem:[#allocation9] sm:$0x1] %vm184, %v183
    $region33: #{tpu_custom_call.1} parent=1 // pred_fallthru
      _
    // Predicated region
    $region34: #{tpu_custom_call.1} parent=1 // pred_check
      _
    $region35: #{tpu_custom_call.1} parent=1 // pred_check_branch
      %187 = sbr.rel (0) target = $region37
    $region36: #{tpu_custom_call.1} parent=1 // pred_region
      %189 = vsyncadd [#allocation6], 0
      %s191 = sshll.u32 [#allocation9], 4
      %s192 = int_to_ptr.vmem [resolvable:$true] %s191
      %s193 = sshll.u32 %s2, 4
      %s194 = int_to_ptr.hbm [resolvable:$true] %s193
      %196 = dma.vmem_to_hbm [thread:$0]  %s192, 16, %s194, [#allocation6]
    $region37: #{tpu_custom_call.1} parent=1 // pred_fallthru
      _
    // Predicated region
    $region38: #{tpu_custom_call.1} parent=1 // pred_check
      _
    $region39: #{tpu_custom_call.1} parent=1 // pred_check_branch
      %198 = sbr.rel (0) target = $region41
    $region40: #{tpu_custom_call.1} parent=1 // pred_region
      %200 = dma.done [#allocation6], 16
    $region41: #{tpu_custom_call.1} parent=1 // pred_fallthru
      _
    %201 = vsyncpa [#allocation5], 1
    %202 = vsyncpa [#allocation8], 1
    %203 = vsyncpa [#allocation6], 1

</llo_original>
